<compile_context>
chip_gen: v7x
topology: tpu7x:2x2x1
jax: 0.10.0
libtpu: 0.0.40
codegen_flags: <defaults>
</compile_context>

<pallas_src>
import jax
import jax.numpy as jnp
from jax.experimental import pallas as pl
from jax.experimental.pallas import tpu as pltpu


_LANES = 128                       # minimum lane-dense width
_WIDE_LANE_CHOICES = (1024, 512, 256, 128)
_TARGET_BLOCK_BYTES = 4 << 20      # ~4 MiB per operand per grid step
_MIN_KERNEL_OUT_BYTES = 1 << 20    # below this, XLA's fused add wins (launch cost)
_SPLIT_MIN_OUT_BYTES = 2 << 20     # force >=2 grid steps (dual-TC) above this
_VMEM_MARGIN_BYTES = 4 << 20
_VMEM_FLOOR_BYTES = 16 << 20


def _add_kernel(x_ref, r_ref, o_ref):
    # Dtype promotion happens in-kernel so mixed-dtype inputs need no extra
    # wrapper-side astype pass over HBM.
    o_ref[...] = x_ref[...].astype(o_ref.dtype) + r_ref[...].astype(o_ref.dtype)


def _round_up(n: int, m: int) -> int:
    return -(-n // m) * m


def _sublane_pack(dtype) -> int:
    # Native packed sublane tile: 8 rows (4-byte), 16 (2-byte), 32 (1-byte).
    return max(8, 32 // jnp.dtype(dtype).itemsize)


def _num_tensorcores() -> int:
    """Best-effort TensorCore count; falls back to 2 (dual-TC-safe default)."""
    try:
        info = pltpu.get_tpu_info()
        for attr in ("num_cores", "core_count", "tensorcore_count", "num_tensorcores"):
            v = getattr(info, attr, None)
            if v:
                return int(v)
    except Exception:
        pass
    try:
        v = getattr(jax.devices()[0], "num_cores", None)
        if v:
            return int(v)
    except Exception:
        pass
    return 2


def add_residual(x, residual, *, force_kernel: bool = False, donate_x: bool = False):
    """Elementwise x + residual.  Pallas kernel for large lane-aligned tensors,
    XLA fused add otherwise (tiny / ragged / broadcasting inputs)."""
    out_dtype = jnp.promote_types(x.dtype, residual.dtype)

    def _fallback():
        return x.astype(out_dtype) + residual.astype(out_dtype)

    if x.shape != residual.shape:
        # Broadcasting add: let XLA handle it.
        return _fallback()

    total = int(x.size)
    out_bytes = total * jnp.dtype(out_dtype).itemsize
    ragged = (total % _LANES) != 0
    tiny = out_bytes < _MIN_KERNEL_OUT_BYTES

    # Fast path: no lane-exact reshape possible (ragged) or launch overhead
    # dominates (tiny).  This replaces the old pad+slice path, which added
    # ~6N bytes of extra HBM traffic on non-divisible sizes.
    if total == 0 or ragged or (tiny and not force_kernel):
        return _fallback()

    # Lane-dense slab: widest of 1024/512/256/128 lanes that divides the size.
    lanes = _LANES
    for c in _WIDE_LANE_CHOICES:
        if total % c == 0:
            lanes = c
            break
    rows = total // lanes

    itemsizes = (jnp.dtype(x.dtype).itemsize,
                 jnp.dtype(residual.dtype).itemsize,
                 jnp.dtype(out_dtype).itemsize)
    max_itemsize = max(itemsizes)
    pack = max(_sublane_pack(x.dtype), _sublane_pack(residual.dtype),
               _sublane_pack(out_dtype))

    # Largest pack-aligned row tile keeping each operand block <= ~4 MiB.
    block_rows_cap = max(
        pack, (_TARGET_BLOCK_BYTES // (lanes * max_itemsize)) // pack * pack)
    steps = pl.cdiv(rows, block_rows_cap)

    # Grid shaping for dual-TC chips (v7x): even step count, >=2 steps (and
    # >=4 steps once >=4 MiB) so both cores get balanced, double-buffered work.
    # Gated on size so single-TC chips (v5e/v6e) don't pay per-step overhead on
    # medium tensors that already fit one block.
    if (_num_tensorcores() >= 2 and out_bytes >= _SPLIT_MIN_OUT_BYTES
            and rows >= 2 * pack):
        steps = max(steps, 2)
        if out_bytes >= 2 * _SPLIT_MIN_OUT_BYTES:
            steps = max(steps, 4)
        if steps % 2:
            steps += 1

    if steps <= 1:
        tile_rows = rows          # single block == full array dim (always legal)
    else:
        tile_rows = max(pack, _round_up(pl.cdiv(rows, steps), pack))
    grid_steps = pl.cdiv(rows, tile_rows)
    # The final block may extend past `rows`: Pallas drops the out-of-bounds
    # writes, and the garbage read there only feeds those dropped outputs.

    block_bytes = tile_rows * lanes * sum(itemsizes)            # all 3 operands
    vmem_limit = max(2 * block_bytes + _VMEM_MARGIN_BYTES, _VMEM_FLOOR_BYTES)

    x2 = x.reshape(rows, lanes)       # free: contiguous reshape, no HBM pass
    r2 = residual.reshape(rows, lanes)

    # Optional buffer donation: reuse x's HBM allocation for the output.
    aliases = {0: 0} if (donate_x and x.dtype == out_dtype) else {}

    out2 = pl.pallas_call(
        _add_kernel,
        out_shape=jax.ShapeDtypeStruct((rows, lanes), out_dtype),
        grid_spec=pltpu.PrefetchScalarGridSpec(
            num_scalar_prefetch=0,
            grid=(grid_steps,),
            in_specs=[
                pl.BlockSpec((tile_rows, lanes), lambda i: (i, 0)),
                pl.BlockSpec((tile_rows, lanes), lambda i: (i, 0)),
            ],
            out_specs=pl.BlockSpec((tile_rows, lanes), lambda i: (i, 0)),
        ),
        compiler_params=pltpu.CompilerParams(
            dimension_semantics=("parallel",),
            vmem_limit_bytes=int(vmem_limit),
        ),
        input_output_aliases=aliases,
    )(x2, r2)

    return out2.reshape(x.shape)


if __name__ == "__main__":
    key = jax.random.PRNGKey(0)
    k1, k2, k3, k4, k5, k6 = jax.random.split(key, 6)

    # 1) Spec-sized NCHW tensors (UNet usage); force the kernel path so the
    #    Pallas code is exercised even though it is below the fast-path size.
    x = jax.random.normal(k1, (2, 4, 16, 16), dtype=jnp.float32)
    residual = jax.random.normal(k2, (2, 4, 16, 16), dtype=jnp.float32)
    out = jax.block_until_ready(add_residual(x, residual, force_kernel=True))
    ref = x + residual
    assert out.shape == ref.shape and out.dtype == ref.dtype
    assert jnp.allclose(out, ref, atol=1e-6, rtol=1e-6)

    # 2) Larger activation-like tensor: default kernel path; on dual-TC chips
    #    this runs 2 grid steps with a partial final row block (520 rows,
    #    264-row tiles), exercising the no-pad boundary handling.
    xl = jax.random.normal(k3, (2, 65, 64, 64), dtype=jnp.float32)
    rl = jax.random.normal(k4, (2, 65, 64, 64), dtype=jnp.float32)
    outl = jax.block_until_ready(add_residual(xl, rl))
    refl = xl + rl
    assert outl.shape == refl.shape
    assert jnp.allclose(outl, refl, atol=1e-6, rtol=1e-6)

    # 3) Ragged bf16 tensor (size not a multiple of 128): exercises the
    #    no-pad fallback path (plain XLA fused add).
    xb = jax.random.normal(k5, (2, 3, 15, 17), dtype=jnp.bfloat16)
    rb = jax.random.normal(k6, (2, 3, 15, 17), dtype=jnp.bfloat16)
    outb = jax.block_until_ready(add_residual(xb, rb))
    refb = xb + rb
    assert outb.shape == refb.shape
    assert jnp.allclose(outb.astype(jnp.float32), refb.astype(jnp.float32),
                        atol=1e-2, rtol=1e-2)

    print("KERNEL_OK")
</pallas_src>

<mosaic_0001>
module attributes {stable_mosaic.version = 11 : i64} {
  func.func @_add_kernel(%arg0: i32, %arg1: memref<2x1024xf32, #tpu.memory_space<vmem>>, %arg2: memref<2x1024xf32, #tpu.memory_space<vmem>>, %arg3: memref<2x1024xf32, #tpu.memory_space<vmem>>) attributes {dimension_semantics = [#tpu.dimension_semantics<parallel>], iteration_bounds = array<i64: 1>, scalar_prefetch = 0 : i64, scratch_operands = 0 : i64, tpu.core_type = #tpu.core_type<tc>, window_params = [{transform_indices = @transform_0, window_bounds = array<i64: 2, 1024>}, {transform_indices = @transform_1, window_bounds = array<i64: 2, 1024>}, {transform_indices = @transform_2, window_bounds = array<i64: 2, 1024>}]} {
    %c0 = arith.constant 0 : index
    %c0_0 = arith.constant 0 : index
    %0 = vector.load %arg1[%c0, %c0_0] : memref<2x1024xf32, #tpu.memory_space<vmem>>, vector<2x1024xf32>
    %c0_1 = arith.constant 0 : index
    %c0_2 = arith.constant 0 : index
    %1 = vector.load %arg2[%c0_1, %c0_2] : memref<2x1024xf32, #tpu.memory_space<vmem>>, vector<2x1024xf32>
    %2 = arith.addf %0, %1 : vector<2x1024xf32>
    %c0_3 = arith.constant 0 : index
    %c0_4 = arith.constant 0 : index
    %3 = vector.load %arg3[%c0_3, %c0_4] : memref<2x1024xf32, #tpu.memory_space<vmem>>, vector<2x1024xf32>
    tpu.vector_store %arg3[%c0_3, %c0_4], %2 {strides = array<i32>} : memref<2x1024xf32, #tpu.memory_space<vmem>>, vector<2x1024xf32>,
    return
  }
  func.func @transform_0(%arg0: i32) -> (i32, i32) {
    %c0_i32 = arith.constant 0 : i32
    %c0_i32_0 = arith.constant 0 : i32
    return %arg0, %c0_i32 : i32, i32
  }
  func.func @transform_1(%arg0: i32) -> (i32, i32) {
    %c0_i32 = arith.constant 0 : i32
    %c0_i32_0 = arith.constant 0 : i32
    return %arg0, %c0_i32 : i32, i32
  }
  func.func @transform_2(%arg0: i32) -> (i32, i32) {
    %c0_i32 = arith.constant 0 : i32
    %c0_i32_0 = arith.constant 0 : i32
    return %arg0, %c0_i32 : i32, i32
  }
}

</mosaic_0001>

<llo_original>
// kernel: tpu_custom_call.1
$region0: #{tpu_custom_call.1}
  #allocation0 [shape = 'u32[]', space=smem, size = 0x4, offset = 0x4, fixed_abs, tag = 'smem constant byte address 0x4 - core index']
  #allocation1 [shape = 'u32[144,128]{1,0:T(1,128)}', space=vmem, size = 0x12000, scoped, tag = 'internal scratch']
  %s0 = inlined_call_operand.hbm [shape: f32[2,1024], index: 0, kind: input, shape index: {}]
  %s1 = inlined_call_operand.hbm [shape: f32[2,1024], index: 1, kind: input, shape index: {}]
  %s2 = inlined_call_operand.hbm [shape: f32[2,1024], index: 2, kind: output, shape index: {}]
  %s3 = sld [smem:[#allocation0]]
  $region26: #{tpu_custom_call.1} parent=0
    _
  %s5 = ssub.s32 1, %s3
  %s6 = scalar_select 0, %s5, %s3
  $region1: #{tpu_custom_call.1} parent=0
    #allocation2 [shape = 'u8[8192]{0}', space=vmem, size = 0x2000, scoped, tag = 'input window, operand 0, single buffered']
    #allocation3 [shape = 's32[1]{0}', space=sflag, size = 0x4, scoped, tag = 'scoped memory for tpu_custom_call.1']
    #allocation4 [shape = 's32[1]{0}', space=sflag, size = 0x4, scoped, tag = 'scoped memory for tpu_custom_call.1']
    #allocation5 [shape = 'u8[8192]{0}', space=vmem, size = 0x2000, scoped, tag = 'input window, operand 1, single buffered']
    #allocation6 [shape = 's32[1]{0}', space=sflag, size = 0x4, scoped, tag = 'scoped memory for tpu_custom_call.1']
    #allocation7 [shape = 'u8[8192]{0}', space=vmem, size = 0x2000, scoped, tag = 'output window, operand 0, single buffered']
    %7 = vsyncpa [#allocation3], 0
    %8 = vsyncpa [#allocation6], 0
    %9 = vsyncpa [#allocation4], 0
    // Predicated region
    $region2: #{tpu_custom_call.1} parent=1 // pred_check
      _
    $region3: #{tpu_custom_call.1} parent=1 // pred_check_branch
      %11 = sbr.rel (0) target = $region5
    $region4: #{tpu_custom_call.1} parent=1 // pred_region
      %s13 = ssub.s32 256, 256
      %14 = vsyncadd [#allocation3], %s13
      %s16 = sshll.u32 [#allocation2], 4
      %s17 = int_to_ptr.vmem [resolvable:$true] %s16
      %19 = dma.hbm_to_vmem [thread:$0]  %s0, 256, %s17, [#allocation3]
    $region5: #{tpu_custom_call.1} parent=1 // pred_fallthru
      _
    // Predicated region
    $region6: #{tpu_custom_call.1} parent=1 // pred_check
      _
    $region7: #{tpu_custom_call.1} parent=1 // pred_check_branch
      %21 = sbr.rel (0) target = $region9
    $region8: #{tpu_custom_call.1} parent=1 // pred_region
      %s23 = ssub.s32 256, 256
      %24 = vsyncadd [#allocation6], %s23
      %s26 = sshll.u32 [#allocation5], 4
      %s27 = int_to_ptr.vmem [resolvable:$true] %s26
      %29 = dma.hbm_to_vmem [thread:$0]  %s1, 256, %s27, [#allocation6]
    $region9: #{tpu_custom_call.1} parent=1 // pred_fallthru
      _
    // Predicated region
    $region10: #{tpu_custom_call.1} parent=1 // pred_check
      _
    $region11: #{tpu_custom_call.1} parent=1 // pred_check_branch
      %31 = sbr.rel (0) target = $region13
    $region12: #{tpu_custom_call.1} parent=1 // pred_region
      %32 = dma.done [#allocation3], 256
    $region13: #{tpu_custom_call.1} parent=1 // pred_fallthru
      _
    // Predicated region
    $region14: #{tpu_custom_call.1} parent=1 // pred_check
      _
    $region15: #{tpu_custom_call.1} parent=1 // pred_check_branch
      %34 = sbr.rel (0) target = $region17
    $region16: #{tpu_custom_call.1} parent=1 // pred_region
      %35 = dma.done [#allocation6], 256
    $region17: #{tpu_custom_call.1} parent=1 // pred_fallthru
      _
    %v36 = vld [vmem:[#allocation2] sm:$0xff]
    %v37 = vld [vmem:[#allocation2 + $0x8] sm:$0xff]
    %v38 = vld [vmem:[#allocation5] sm:$0xff]
    %v39 = vld [vmem:[#allocation5 + $0x8] sm:$0xff]
    %v40 = vadd.f32 %v36, %v38
    %v41 = vadd.f32 %v37, %v39
    %42 = vst [vmem:[#allocation7] sm:$0xff] %v40
    %43 = vst [vmem:[#allocation7 + $0x8] sm:$0xff] %v41
    // Predicated region
    $region18: #{tpu_custom_call.1} parent=1 // pred_check
      _
    $region19: #{tpu_custom_call.1} parent=1 // pred_check_branch
      %45 = sbr.rel (0) target = $region21
    $region20: #{tpu_custom_call.1} parent=1 // pred_region
      %s47 = ssub.s32 256, 256
      %48 = vsyncadd [#allocation4], %s47
      %s50 = sshll.u32 [#allocation7], 4
      %s51 = int_to_ptr.vmem [resolvable:$true] %s50
      %53 = dma.vmem_to_hbm [thread:$0]  %s51, 256, %s2, [#allocation4]
    $region21: #{tpu_custom_call.1} parent=1 // pred_fallthru
      _
    // Predicated region
    $region22: #{tpu_custom_call.1} parent=1 // pred_check
      _
    $region23: #{tpu_custom_call.1} parent=1 // pred_check_branch
      %55 = sbr.rel (0) target = $region25
    $region24: #{tpu_custom_call.1} parent=1 // pred_region
      %56 = dma.done [#allocation4], 256
    $region25: #{tpu_custom_call.1} parent=1 // pred_fallthru
      _
    %57 = vsyncpa [#allocation3], 1
    %58 = vsyncpa [#allocation6], 1
    %59 = vsyncpa [#allocation4], 1

</llo_original>
